<compile_context>
chip_gen: v5e
topology: v5e:2x2
jax: 0.10.0
libtpu: 0.0.40
codegen_flags: <defaults>
</compile_context>

<pallas_src>
import jax
import jax.numpy as jnp
from jax.experimental import pallas as pl
from jax.experimental.pallas import tpu as pltpu


def _pick_tile(dim, target, quantum):
    """Largest tile <= target that evenly tiles `dim` in steps of `quantum`.

    Falls back to the full extent (always a legal block) when `dim` is small
    or has no suitable divisor.
    """
    if dim <= target:
        return dim
    t = (target // quantum) * quantum
    while t >= quantum:
        if dim % t == 0:
            return t
        t -= quantum
    return dim


# ---------------------------------------------------------------------------
# Stages 1 & 3: batched matmul + bias  (out = x @ w + b), 2-D parallel grid.
# ---------------------------------------------------------------------------
def _matmul_bias_kernel(x_ref, w_ref, b_ref, o_ref):
    # (tm, K) @ (K, tn) on the MXU, f32 accumulation, broadcast bias add.
    o_ref[...] = (
        jnp.dot(x_ref[...], w_ref[...], preferred_element_type=jnp.float32)
        + b_ref[...]
    ).astype(o_ref.dtype)


def matmul_bias(x, w, b, *, tm_target=256, tn_target=512):
    """x: (M, K), w: (K, N), b: (1, N) -> (M, N) f32."""
    M, K = x.shape
    _, N = w.shape
    tm = _pick_tile(M, tm_target, 8)
    tn = _pick_tile(N, tn_target, 128)   # lane-dense (>=128) output tiles
    grid = (M // tm, N // tn)
    return pl.pallas_call(
        _matmul_bias_kernel,
        out_shape=jax.ShapeDtypeStruct((M, N), jnp.float32),
        grid_spec=pltpu.PrefetchScalarGridSpec(
            num_scalar_prefetch=0,
            grid=grid,
            in_specs=[
                pl.BlockSpec((tm, K), lambda i, j: (i, 0)),   # activations
                pl.BlockSpec((K, tn), lambda i, j: (0, j)),   # weight (N-tiled)
                pl.BlockSpec((1, tn), lambda i, j: (0, j)),   # bias
            ],
            out_specs=pl.BlockSpec((tm, tn), lambda i, j: (i, j)),
        ),
        compiler_params=pltpu.CompilerParams(
            dimension_semantics=("parallel", "parallel")),
    )(x, w, b)


# ---------------------------------------------------------------------------
# Stage 2: LSTM recurrence only (h @ W_hh^T + cell update), chunked over time.
# ---------------------------------------------------------------------------
def _lstm_recurrence_kernel(gx_ref, whh_ref, h_out_ref, h_sc, c_sc):
    # gx_ref : (B, Tt, 4H) precomputed x@W_ih^T + bias for this time chunk
    # whh_ref: (H, 4H)     recurrent weight (resident)
    # h_out  : (B, Tt, H)  hidden states for this chunk
    # h_sc/c_sc: (B, H) f32 state carried across grid steps (sequential axis).
    @pl.when(pl.program_id(0) == 0)
    def _():
        h_sc[...] = jnp.zeros_like(h_sc)
        c_sc[...] = jnp.zeros_like(c_sc)

    tt_chunk = gx_ref.shape[1]
    H = h_sc.shape[-1]
    whh = whh_ref[...]                       # load once per chunk

    # Fully unrolled over the small static chunk: only the serial dependency
    # (h @ W_hh^T and the cell update) remains inside the recurrence.
    for tt in range(tt_chunk):
        h = h_sc[...]
        c = c_sc[...]
        gates = gx_ref[:, tt, :] + jnp.dot(
            h, whh, preferred_element_type=jnp.float32)       # (B, 4H) f32
        # PyTorch gate order [i | f | g | o]; these static slices are
        # lane-tile aligned whenever H % 128 == 0.
        i_g = jax.nn.sigmoid(gates[:, 0 * H:1 * H])
        f_g = jax.nn.sigmoid(gates[:, 1 * H:2 * H])
        g_g = jnp.tanh(gates[:, 2 * H:3 * H])
        o_g = jax.nn.sigmoid(gates[:, 3 * H:4 * H])
        c_new = f_g * c + i_g * g_g
        h_new = o_g * jnp.tanh(c_new)
        c_sc[...] = c_new
        h_sc[...] = h_new
        h_out_ref[:, tt, :] = h_new.astype(h_out_ref.dtype)


def lstm_recurrence(gx_bt4h, w_hh_t, *, tt_target=16):
    """gx: (B, T, 4H) f32; w_hh_t: (H, 4H) f32 -> h: (B, T, H) f32."""
    B, T, G4 = gx_bt4h.shape
    H = w_hh_t.shape[0]
    tt = _pick_tile(T, tt_target, 8)         # multiple timesteps per grid step
    grid = (T // tt,)
    return pl.pallas_call(
        _lstm_recurrence_kernel,
        out_shape=jax.ShapeDtypeStruct((B, T, H), jnp.float32),
        grid_spec=pltpu.PrefetchScalarGridSpec(
            num_scalar_prefetch=0,
            grid=grid,
            in_specs=[
                pl.BlockSpec((B, tt, G4), lambda t: (0, t, 0)),  # gate inputs
                pl.BlockSpec((H, G4), lambda t: (0, 0)),         # W_hh^T
            ],
            out_specs=pl.BlockSpec((B, tt, H), lambda t: (0, t, 0)),
            scratch_shapes=[
                pltpu.VMEM((B, H), jnp.float32),   # h state (carried)
                pltpu.VMEM((B, H), jnp.float32),   # c state (carried)
            ],
        ),
        compiler_params=pltpu.CompilerParams(
            # Recurrent time axis MUST stay sequential ("arbitrary").
            dimension_semantics=("arbitrary",)),
    )(gx_bt4h, w_hh_t)


# ---------------------------------------------------------------------------
# Full forward
# ---------------------------------------------------------------------------
def decoder_rnn_forward(features, captions, params):
    """features: (B, E) f32; captions: (B, Tc) int32 -> logits (B, Tc, V) f32."""
    B, E = features.shape
    T = captions.shape[1]                    # 1 (features) + (Tc - 1) = Tc
    H = params["w_hh"].shape[1]
    V = params["w_fc"].shape[0]

    # Embedding gather + concat: plain-JAX glue, batch-major so no transposes.
    # TODO(synk): could be fused into the kernel via scalar-prefetched caption
    # ids + per-chunk DMA row-gather of the embedding table.
    emb = params["embedding"][captions[:, :-1]]                  # (B, T-1, E)
    inputs = jnp.concatenate([features[:, None, :], emb], 1)     # (B, T, E)

    # bf16 weights / activations for the two big matmuls (halves HBM + VMEM
    # bytes; MXU-native), f32 accumulation inside the kernels.
    w_ih_t = params["w_ih"].T.astype(jnp.bfloat16)               # (E, 4H)
    w_fc_t = params["w_fc"].T.astype(jnp.bfloat16)               # (H, V)
    b_gates = (params["b_ih"] + params["b_hh"])[None, :]         # (1, 4H) f32
    b_fc = params["b_fc"][None, :]                               # (1, V)  f32

    # Stage 1: hoisted input projection for ALL timesteps (parallel grid).
    x_flat = inputs.reshape(B * T, E).astype(jnp.bfloat16)       # (B*T, E)
    gx = matmul_bias(x_flat, w_ih_t, b_gates).reshape(B, T, 4 * H)

    # Stage 2: sequential LSTM recurrence (f32 state / nonlinearities).
    hs = lstm_recurrence(gx, params["w_hh"].T)                   # (B, T, H) f32

    # Stage 3: hoisted output projection, vocab-tiled 2-D parallel grid.
    logits = matmul_bias(hs.reshape(B * T, H).astype(jnp.bfloat16),
                         w_fc_t, b_fc)                           # (B*T, V) f32
    return logits.reshape(B, T, V)                               # (B, T, V)


def init_params(key, embed_size, hidden_size, vocab_size):
    ks = jax.random.split(key, 7)
    s = 1.0 / jnp.sqrt(hidden_size)
    u = lambda k, shape: jax.random.uniform(k, shape, jnp.float32, -s, s)
    return {
        "embedding": jax.random.normal(ks[0], (vocab_size, embed_size), jnp.float32),
        "w_ih": u(ks[1], (4 * hidden_size, embed_size)),   # PyTorch weight_ih_l0
        "w_hh": u(ks[2], (4 * hidden_size, hidden_size)),  # PyTorch weight_hh_l0
        "b_ih": u(ks[3], (4 * hidden_size,)),
        "b_hh": u(ks[4], (4 * hidden_size,)),
        "w_fc": u(ks[5], (vocab_size, hidden_size)),       # nn.Linear weight (V, H)
        "b_fc": u(ks[6], (vocab_size,)),
    }


if __name__ == "__main__":
    B, E, H, V, Tc = 2, 32, 32, 64, 8   # batch, embed, hidden, vocab, caption len

    key = jax.random.PRNGKey(0)
    k_params, k_feat, k_cap = jax.random.split(key, 3)

    params = init_params(k_params, E, H, V)
    features = jax.random.normal(k_feat, (B, E), jnp.float32)
    captions = jax.random.randint(k_cap, (B, Tc), 0, V, jnp.int32)

    out = decoder_rnn_forward(features, captions, params)   # (B, Tc, V)
    jax.block_until_ready(out)
    assert out.shape == (B, Tc, V)
    print("KERNEL_OK")
</pallas_src>

<mosaic_0001>
module attributes {stable_mosaic.version = 11 : i64} {
  func.func @_matmul_bias_kernel(%arg0: i32, %arg1: i32, %arg2: memref<16x32xbf16, #tpu.memory_space<vmem>>, %arg3: memref<32x128xbf16, #tpu.memory_space<vmem>>, %arg4: memref<1x128xf32, #tpu.memory_space<vmem>>, %arg5: memref<16x128xf32, #tpu.memory_space<vmem>>) attributes {dimension_semantics = [#tpu.dimension_semantics<parallel>, #tpu.dimension_semantics<parallel>], iteration_bounds = array<i64: 1, 1>, scalar_prefetch = 0 : i64, scratch_operands = 0 : i64, tpu.core_type = #tpu.core_type<tc>, window_params = [{transform_indices = @transform_0, window_bounds = array<i64: 16, 32>}, {transform_indices = @transform_1, window_bounds = array<i64: 32, 128>}, {transform_indices = @transform_2, window_bounds = array<i64: 1, 128>}, {transform_indices = @transform_3, window_bounds = array<i64: 16, 128>}]} {
    %c0 = arith.constant 0 : index
    %c0_0 = arith.constant 0 : index
    %0 = vector.load %arg2[%c0, %c0_0] : memref<16x32xbf16, #tpu.memory_space<vmem>>, vector<16x32xbf16>
    %c0_1 = arith.constant 0 : index
    %c0_2 = arith.constant 0 : index
    %1 = vector.load %arg3[%c0_1, %c0_2] : memref<32x128xbf16, #tpu.memory_space<vmem>>, vector<32x128xbf16>
    %cst = arith.constant dense<0.000000e+00> : vector<16x128xf32>
    %2 = tpu.matmul %0, %1, %cst {dimension_numbers = #tpu.dot_dimension_numbers<[1], [0], [0], [1], [0, 0, 1, 1], [], []>} : vector<16x32xbf16>, vector<32x128xbf16>, vector<16x128xf32> -> vector<16x128xf32>
    %c0_3 = arith.constant 0 : index
    %c0_4 = arith.constant 0 : index
    %3 = vector.load %arg4[%c0_3, %c0_4] : memref<1x128xf32, #tpu.memory_space<vmem>>, vector<1x128xf32>
    %4 = vector.broadcast %3 : vector<1x128xf32> to vector<16x128xf32>
    %5 = arith.addf %2, %4 : vector<16x128xf32>
    %c0_5 = arith.constant 0 : index
    %c0_6 = arith.constant 0 : index
    %6 = vector.load %arg5[%c0_5, %c0_6] : memref<16x128xf32, #tpu.memory_space<vmem>>, vector<16x128xf32>
    tpu.vector_store %arg5[%c0_5, %c0_6], %5 {strides = array<i32>} : memref<16x128xf32, #tpu.memory_space<vmem>>, vector<16x128xf32>,
    return
  }
  func.func @transform_0(%arg0: i32, %arg1: i32) -> (i32, i32) {
    %c0_i32 = arith.constant 0 : i32
    %c0_i32_0 = arith.constant 0 : i32
    return %arg0, %c0_i32 : i32, i32
  }
  func.func @transform_1(%arg0: i32, %arg1: i32) -> (i32, i32) {
    %c0_i32 = arith.constant 0 : i32
    %c0_i32_0 = arith.constant 0 : i32
    return %c0_i32, %arg1 : i32, i32
  }
  func.func @transform_2(%arg0: i32, %arg1: i32) -> (i32, i32) {
    %c0_i32 = arith.constant 0 : i32
    %c0_i32_0 = arith.constant 0 : i32
    return %c0_i32, %arg1 : i32, i32
  }
  func.func @transform_3(%arg0: i32, %arg1: i32) -> (i32, i32) {
    %c0_i32 = arith.constant 0 : i32
    return %arg0, %arg1 : i32, i32
  }
}

</mosaic_0001>

<llo_original>
// kernel: tpu_custom_call.1
$region0: #{tpu_custom_call.1}
  #allocation0 [shape = 'u32[]', space=smem, size = 0x4, offset = 0x4, fixed_abs, tag = 'smem constant byte address 0x4 - core index']
  #allocation1 [shape = 'u32[72,128]{1,0:T(1,128)}', space=vmem, size = 0x9000, scoped, tag = 'internal scratch']
  %s0 = inlined_call_operand.hbm [shape: bf16[16,32], index: 0, kind: input, shape index: {}]
  %s1 = inlined_call_operand.hbm [shape: bf16[32,128], index: 1, kind: input, shape index: {}]
  %s2 = inlined_call_operand.vmem [shape: f32[1,128], index: 2, kind: input, shape index: {}]
  %s3 = inlined_call_operand.hbm [shape: f32[16,128], index: 3, kind: output, shape index: {}]
  %s4 = sld [smem:[#allocation0]]
  $region30: #{tpu_custom_call.1} parent=0
    _
  %s6 = ssub.s32 1, %s4
  %s7 = scalar_select 0, %s6, %s4
  $region1: #{tpu_custom_call.1} parent=0
    #allocation2 [shape = 'u8[4096]{0}', space=vmem, size = 0x1000, scoped, tag = 'input window, operand 0, single buffered']
    #allocation3 [shape = 's32[1]{0}', space=sflag, size = 0x4, scoped, tag = 'scoped memory for tpu_custom_call.1']
    #allocation4 [shape = 's32[1]{0}', space=sflag, size = 0x4, scoped, tag = 'scoped memory for tpu_custom_call.1']
    #allocation5 [shape = 'u8[8192]{0}', space=vmem, size = 0x2000, scoped, tag = 'input window, operand 1, single buffered']
    #allocation6 [shape = 's32[1]{0}', space=sflag, size = 0x4, scoped, tag = 'scoped memory for tpu_custom_call.1']
    #allocation7 [shape = 'u8[8192]{0}', space=vmem, size = 0x2000, scoped, tag = 'output window, operand 0, single buffered']
    %8 = vsyncpa [#allocation3], 0
    %9 = vsyncpa [#allocation6], 0
    %10 = vsyncpa [#allocation4], 0
    // Predicated region
    $region2: #{tpu_custom_call.1} parent=1 // pred_check
      _
    $region3: #{tpu_custom_call.1} parent=1 // pred_check_branch
      %12 = sbr.rel (0) target = $region5
    $region4: #{tpu_custom_call.1} parent=1 // pred_region
      %14 = vsyncadd [#allocation3], 0
      %s15 = sshll.u32 %s0, 4
      %s16 = int_to_ptr.hbm [resolvable:$true] %s15
      %s17 = sshll.u32 [#allocation2], 4
      %s18 = int_to_ptr.vmem [resolvable:$true] %s17
      %23 = dma.hbm_to_vmem [thread:$0]  %s16, 128, %s18, [#allocation3], 64, 64, 4
    $region5: #{tpu_custom_call.1} parent=1 // pred_fallthru
      _
    // Predicated region
    $region6: #{tpu_custom_call.1} parent=1 // pred_check
      _
    $region7: #{tpu_custom_call.1} parent=1 // pred_check_branch
      %25 = sbr.rel (0) target = $region9
    $region8: #{tpu_custom_call.1} parent=1 // pred_region
      %27 = vsyncadd [#allocation6], 0
      %s28 = sshll.u32 %s1, 4
      %s29 = int_to_ptr.hbm [resolvable:$true] %s28
      %s30 = sshll.u32 [#allocation5], 4
      %s31 = int_to_ptr.vmem [resolvable:$true] %s30
      %36 = dma.hbm_to_vmem [thread:$0]  %s29, 256, %s31, [#allocation6], 64, 64, 4
    $region9: #{tpu_custom_call.1} parent=1 // pred_fallthru
      _
    // Predicated region
    $region10: #{tpu_custom_call.1} parent=1 // pred_check
      _
    $region11: #{tpu_custom_call.1} parent=1 // pred_check_branch
      %38 = sbr.rel (0) target = $region13
    $region12: #{tpu_custom_call.1} parent=1 // pred_region
      _
    $region13: #{tpu_custom_call.1} parent=1 // pred_fallthru
      _
    // Predicated region
    $region14: #{tpu_custom_call.1} parent=1 // pred_check
      _
    $region15: #{tpu_custom_call.1} parent=1 // pred_check_branch
      %40 = sbr.rel (0) target = $region17
    $region16: #{tpu_custom_call.1} parent=1 // pred_region
      %42 = dma.done [#allocation3], 128
    $region17: #{tpu_custom_call.1} parent=1 // pred_fallthru
      _
    // Predicated region
    $region18: #{tpu_custom_call.1} parent=1 // pred_check
      _
    $region19: #{tpu_custom_call.1} parent=1 // pred_check_branch
      %44 = sbr.rel (0) target = $region21
    $region20: #{tpu_custom_call.1} parent=1 // pred_region
      %46 = dma.done [#allocation6], 256
    $region21: #{tpu_custom_call.1} parent=1 // pred_fallthru
      _
    %v48 = vld [vmem:[#allocation2] sm:$0xf]
    %v49 = vld [vmem:[#allocation2 + $0x4] sm:$0xf]
    %v50 = vld [vmem:[#allocation5] sm:$0xf]
    %v51 = vld [vmem:[#allocation5 + $0x4] sm:$0xf]
    %v52 = vld [vmem:[#allocation5 + $0x8] sm:$0xf]
    %v53 = vld [vmem:[#allocation5 + $0xc] sm:$0xf]
    %v54 = vld [vmem:[%s2] sm:$0x1]
    %v56 = vperm.slane %v54, 0
    %v60 = vunpack.c.l.b16 %v48
    %v61 = vunpack.c.l.b16 %v49
    %v62 = vpack.c.b16 %v61, %v60
    %v67 = vunpack.c.l.b16 %v50
    %v68 = vunpack.c.l.b16 %v51
    %v69 = vunpack.c.l.b16 %v52
    %v70 = vunpack.c.l.b16 %v53
    %v71 = vpack.c.b16 %v68, %v67
    %v72 = vpack.c.b16 %v70, %v69
    %vm75 = vcmask 261120
    %v77 = vsel %vm75, %v62, 0
    %79 = vmatpush.bf16.msra.mxu0 0
    %80 = vmatpush.bf16.msra.mxu0 0
    %81 = vmatpush.bf16.msra.mxu0 0
    %82 = vmatpush.bf16.msra.mxu0 0
    %83 = vmatpush.bf16.msra.mxu0 0
    %84 = vmatpush.bf16.msra.mxu0 0
    %85 = vmatpush.bf16.msra.mxu0 %v72
    %86 = vmatpush.bf16.msra.mxu0 %v71
    %87 = vmatmul.bf16.gmra.mxu0 %v77
    %v88 = vpop.f32.mrf.mxu0
    %v89 = vadd.f32 %v56, %v88
    %v90 = vpop.f32.mrf.mxu0
    %v91 = vadd.f32 %v56, %v90
    %92 = vdwg.mxu0
    %93 = vst [vmem:[#allocation7] sm:$0xff] %v89
    %94 = vst [vmem:[#allocation7 + $0x8] sm:$0xff] %v91
    // Predicated region
    $region22: #{tpu_custom_call.1} parent=1 // pred_check
      _
    $region23: #{tpu_custom_call.1} parent=1 // pred_check_branch
      %96 = sbr.rel (0) target = $region25
    $region24: #{tpu_custom_call.1} parent=1 // pred_region
      %98 = vsyncadd [#allocation4], 0
      %s99 = sshll.u32 [#allocation7], 4
      %s100 = int_to_ptr.vmem [resolvable:$true] %s99
      %s101 = sshll.u32 %s3, 4
      %s102 = int_to_ptr.hbm [resolvable:$true] %s101
      %107 = dma.vmem_to_hbm [thread:$0]  %s100, 256, %s102, [#allocation4], 128, 128, 8
    $region25: #{tpu_custom_call.1} parent=1 // pred_fallthru
      _
    // Predicated region
    $region26: #{tpu_custom_call.1} parent=1 // pred_check
      _
    $region27: #{tpu_custom_call.1} parent=1 // pred_check_branch
      %109 = sbr.rel (0) target = $region29
    $region28: #{tpu_custom_call.1} parent=1 // pred_region
      %111 = dma.done [#allocation4], 256
    $region29: #{tpu_custom_call.1} parent=1 // pred_fallthru
      _
    %112 = vsyncpa [#allocation3], 1
    %113 = vsyncpa [#allocation6], 1
    %114 = vsyncpa [#allocation4], 1

</llo_original>
